<compile_context>
chip_gen: v5e
topology: v5e:2x2
jax: 0.10.0
libtpu: 0.0.40
codegen_flags: <defaults>
</compile_context>

<pallas_src>
import jax
import jax.numpy as jnp
from jax.experimental import pallas as pl
from jax.experimental.pallas import tpu as pltpu


def _round_up(x, m):
    return ((x + m - 1) // m) * m


def mlp_kernel(xt_ref, w1_ref, b1_ref, w2_ref, b2_ref, o_ref):
    # Layer 1 on the MXU: (Dh, Din) @ (Din, TB) -> (Dh, TB), bf16 in / f32 acc.
    h = jnp.dot(w1_ref[...], xt_ref[...], preferred_element_type=jnp.float32)
    h = jnp.maximum(h + b1_ref[...], 0.0)          # bias (Dh, 1) bcast over lanes; ReLU f32
    # Layer 2 on the MXU: (Dout, Dh) @ (Dh, TB) -> (Dout, TB), bf16 in / f32 acc.
    out = jnp.dot(w2_ref[...], h.astype(jnp.bfloat16),
                  preferred_element_type=jnp.float32)
    o_ref[...] = (out + b2_ref[...]).astype(o_ref.dtype)


def _choose_tb(B, tb_max):
    # Lane axis: block last dim must be a multiple of 128 or equal the full B.
    if B <= 256:
        return B                                   # single block, tiny problem
    tb = min(tb_max, _round_up(pl.cdiv(B, 2), 128))  # >=2 steps (v7x megacore)
    return min(tb, _round_up(B, 128))


def mlp_forward_t(x_t, w1, b1, w2, b2, *, tb_max=4096):
    """Kernel-facing entry point.

    x_t: (Din, B) bf16   -- feature-major, producer-supplied layout.
    w1:  (Dh, Din) bf16  -- PyTorch linear1.weight layout (out, in).
    b1:  (Dh, 1)  f32
    w2:  (Dout, Dh) bf16 -- PyTorch linear3.weight layout (out, in).
    b2:  (Dout, 1) f32
    Returns out^T: (Dout, B) f32.
    """
    Din, B = x_t.shape
    Dh = w1.shape[0]
    Dout = w2.shape[0]

    TB = _choose_tb(B, tb_max)
    grid = (pl.cdiv(B, TB),)

    return pl.pallas_call(
        mlp_kernel,
        out_shape=jax.ShapeDtypeStruct((Dout, B), jnp.float32),
        grid_spec=pl.GridSpec(
            grid=grid,
            in_specs=[
                pl.BlockSpec((Din, TB), lambda i: (0, i)),    # x^T: tiled over batch (lanes)
                pl.BlockSpec((Dh, Din), lambda i: (0, 0)),    # W1: VMEM-resident
                pl.BlockSpec((Dh, 1), lambda i: (0, 0)),      # b1: VMEM-resident
                pl.BlockSpec((Dout, Dh), lambda i: (0, 0)),   # W2: VMEM-resident
                pl.BlockSpec((Dout, 1), lambda i: (0, 0)),    # b2: VMEM-resident
            ],
            out_specs=pl.BlockSpec((Dout, TB), lambda i: (0, i)),  # lane-dense output
        ),
        compiler_params=pltpu.CompilerParams(
            dimension_semantics=("parallel",)),   # shard batch tiles across TCs (v7x)
    )(x_t, w1, b1, w2, b2)


def mlp_forward(x, w1, b1, w2, b2, *, tb_max=4096):
    """PyTorch-semantics wrapper: x (B, Din) f32, weights (out, in), biases (out,).

    Layout/dtype plumbing (ideally done by the upstream producer): transpose x to
    feature-major and cast to bf16 once, then transpose the (Dout, B) result back.
    """
    x_t = x.T.astype(jnp.bfloat16)
    out_t = mlp_forward_t(
        x_t,
        w1.astype(jnp.bfloat16), b1.reshape(-1, 1).astype(jnp.float32),
        w2.astype(jnp.bfloat16), b2.reshape(-1, 1).astype(jnp.float32),
        tb_max=tb_max)
    return out_t.T


def init_params(key):
    # Deterministic init mirroring nn.Linear: uniform(-1/sqrt(fan_in), 1/sqrt(fan_in)),
    # weights stored in PyTorch (out, in) layout.
    k1, k2, k3, k4 = jax.random.split(key, 4)
    lim1 = 1.0 / jnp.sqrt(21.0)
    lim2 = 1.0 / jnp.sqrt(128.0)
    w1 = jax.random.uniform(k1, (128, 21), jnp.float32, -lim1, lim1)   # linear1.weight
    b1 = jax.random.uniform(k2, (128,), jnp.float32, -lim1, lim1)      # linear1.bias
    w2 = jax.random.uniform(k3, (4, 128), jnp.float32, -lim2, lim2)    # linear3.weight
    b2 = jax.random.uniform(k4, (4,), jnp.float32, -lim2, lim2)        # linear3.bias
    return w1, b1, w2, b2


def _reference_f32(x, w1, b1, w2, b2):
    h = jnp.maximum(x @ w1.T + b1, 0.0)
    return h @ w2.T + b2


def _reference_bf16(x, w1, b1, w2, b2):
    # Same bf16-input / f32-accumulate numerics as the kernel (transposed form).
    xt = x.T.astype(jnp.bfloat16)
    h = jnp.dot(w1.astype(jnp.bfloat16), xt, preferred_element_type=jnp.float32)
    h = jnp.maximum(h + b1.reshape(-1, 1), 0.0)
    out = jnp.dot(w2.astype(jnp.bfloat16), h.astype(jnp.bfloat16),
                  preferred_element_type=jnp.float32) + b2.reshape(-1, 1)
    return out.T


if __name__ == "__main__":
    key = jax.random.PRNGKey(0)
    kx1, kx2, kp = jax.random.split(key, 3)
    w1, b1, w2, b2 = init_params(kp)

    # Small batch (single block path).
    B1 = 8
    x1 = jax.random.normal(kx1, (B1, 21), jnp.float32)
    out1 = jax.block_until_ready(mlp_forward(x1, w1, b1, w2, b2))
    assert out1.shape == (B1, 4)
    assert jnp.allclose(out1, _reference_bf16(x1, w1, b1, w2, b2), atol=1e-3, rtol=1e-3)
    assert jnp.allclose(out1, _reference_f32(x1, w1, b1, w2, b2), atol=5e-2, rtol=5e-2)

    # Multi-tile path: 2 grid steps (TB=256), partial last tile, lane-dense stores.
    B2 = 384
    x2 = jax.random.normal(kx2, (B2, 21), jnp.float32)
    out2 = jax.block_until_ready(mlp_forward(x2, w1, b1, w2, b2))
    assert out2.shape == (B2, 4)
    assert jnp.allclose(out2, _reference_bf16(x2, w1, b1, w2, b2), atol=1e-3, rtol=1e-3)
    assert jnp.allclose(out2, _reference_f32(x2, w1, b1, w2, b2), atol=5e-2, rtol=5e-2)

    print("KERNEL_OK")
</pallas_src>

<mosaic_0001>
module attributes {stable_mosaic.version = 11 : i64} {
  func.func @mlp_kernel(%arg0: i32, %arg1: memref<21x8xbf16, #tpu.memory_space<vmem>>, %arg2: memref<128x21xbf16, #tpu.memory_space<vmem>>, %arg3: memref<128x1xf32, #tpu.memory_space<vmem>>, %arg4: memref<4x128xbf16, #tpu.memory_space<vmem>>, %arg5: memref<4x1xf32, #tpu.memory_space<vmem>>, %arg6: memref<4x8xf32, #tpu.memory_space<vmem>>) attributes {dimension_semantics = [#tpu.dimension_semantics<parallel>], iteration_bounds = array<i64: 1>, scalar_prefetch = 0 : i64, scratch_operands = 0 : i64, tpu.core_type = #tpu.core_type<tc>, window_params = [{transform_indices = @transform_0, window_bounds = array<i64: 21, 8>}, {pipeline_mode = #tpu.pipeline_mode<synchronous>, transform_indices = @transform_1, window_bounds = array<i64: 128, 21>}, {pipeline_mode = #tpu.pipeline_mode<synchronous>, transform_indices = @transform_2, window_bounds = array<i64: 128, 1>}, {pipeline_mode = #tpu.pipeline_mode<synchronous>, transform_indices = @transform_3, window_bounds = array<i64: 4, 128>}, {pipeline_mode = #tpu.pipeline_mode<synchronous>, transform_indices = @transform_4, window_bounds = array<i64: 4, 1>}, {transform_indices = @transform_5, window_bounds = array<i64: 4, 8>}]} {
    %c0 = arith.constant 0 : index
    %c0_0 = arith.constant 0 : index
    %0 = vector.load %arg2[%c0, %c0_0] : memref<128x21xbf16, #tpu.memory_space<vmem>>, vector<128x21xbf16>
    %c0_1 = arith.constant 0 : index
    %c0_2 = arith.constant 0 : index
    %1 = vector.load %arg1[%c0_1, %c0_2] : memref<21x8xbf16, #tpu.memory_space<vmem>>, vector<21x8xbf16>
    %cst = arith.constant dense<0.000000e+00> : vector<128x8xf32>
    %2 = tpu.matmul %0, %1, %cst {dimension_numbers = #tpu.dot_dimension_numbers<[1], [0], [0], [1], [0, 0, 1, 1], [], []>} : vector<128x21xbf16>, vector<21x8xbf16>, vector<128x8xf32> -> vector<128x8xf32>
    %c0_3 = arith.constant 0 : index
    %c0_4 = arith.constant 0 : index
    %3 = vector.load %arg3[%c0_3, %c0_4] : memref<128x1xf32, #tpu.memory_space<vmem>>, vector<128x1xf32>
    %4 = vector.broadcast %3 : vector<128x1xf32> to vector<128x8xf32>
    %5 = arith.addf %2, %4 : vector<128x8xf32>
    %cst_5 = arith.constant 0.000000e+00 : f32
    %6 = vector.broadcast %cst_5 : f32 to vector<128x8xf32>
    %7 = arith.maximumf %5, %6 : vector<128x8xf32>
    %c0_6 = arith.constant 0 : index
    %c0_7 = arith.constant 0 : index
    %8 = vector.load %arg4[%c0_6, %c0_7] : memref<4x128xbf16, #tpu.memory_space<vmem>>, vector<4x128xbf16>
    %9 = arith.truncf %7 : vector<128x8xf32> to vector<128x8xbf16>
    %cst_8 = arith.constant dense<0.000000e+00> : vector<4x8xf32>
    %10 = tpu.matmul %8, %9, %cst_8 {dimension_numbers = #tpu.dot_dimension_numbers<[1], [0], [0], [1], [0, 0, 1, 1], [], []>} : vector<4x128xbf16>, vector<128x8xbf16>, vector<4x8xf32> -> vector<4x8xf32>
    %c0_9 = arith.constant 0 : index
    %c0_10 = arith.constant 0 : index
    %11 = vector.load %arg5[%c0_9, %c0_10] : memref<4x1xf32, #tpu.memory_space<vmem>>, vector<4x1xf32>
    %12 = vector.broadcast %11 : vector<4x1xf32> to vector<4x8xf32>
    %13 = arith.addf %10, %12 : vector<4x8xf32>
    %c0_11 = arith.constant 0 : index
    %c0_12 = arith.constant 0 : index
    %14 = vector.load %arg6[%c0_11, %c0_12] : memref<4x8xf32, #tpu.memory_space<vmem>>, vector<4x8xf32>
    tpu.vector_store %arg6[%c0_11, %c0_12], %13 {strides = array<i32>} : memref<4x8xf32, #tpu.memory_space<vmem>>, vector<4x8xf32>,
    return
  }
  func.func @transform_0(%arg0: i32) -> (i32, i32) {
    %c0_i32 = arith.constant 0 : i32
    %c0_i32_0 = arith.constant 0 : i32
    return %c0_i32, %arg0 : i32, i32
  }
  func.func @transform_1(%arg0: i32) -> (i32, i32) {
    %c0_i32 = arith.constant 0 : i32
    %c0_i32_0 = arith.constant 0 : i32
    %c0_i32_1 = arith.constant 0 : i32
    return %c0_i32, %c0_i32_0 : i32, i32
  }
  func.func @transform_2(%arg0: i32) -> (i32, i32) {
    %c0_i32 = arith.constant 0 : i32
    %c0_i32_0 = arith.constant 0 : i32
    %c0_i32_1 = arith.constant 0 : i32
    return %c0_i32, %c0_i32_0 : i32, i32
  }
  func.func @transform_3(%arg0: i32) -> (i32, i32) {
    %c0_i32 = arith.constant 0 : i32
    %c0_i32_0 = arith.constant 0 : i32
    %c0_i32_1 = arith.constant 0 : i32
    return %c0_i32, %c0_i32_0 : i32, i32
  }
  func.func @transform_4(%arg0: i32) -> (i32, i32) {
    %c0_i32 = arith.constant 0 : i32
    %c0_i32_0 = arith.constant 0 : i32
    %c0_i32_1 = arith.constant 0 : i32
    return %c0_i32, %c0_i32_0 : i32, i32
  }
  func.func @transform_5(%arg0: i32) -> (i32, i32) {
    %c0_i32 = arith.constant 0 : i32
    %c0_i32_0 = arith.constant 0 : i32
    return %c0_i32, %arg0 : i32, i32
  }
}

</mosaic_0001>

<llo_original>
// kernel: tpu_custom_call.1
$region0: #{tpu_custom_call.1}
  #allocation0 [shape = 'u32[]', space=smem, size = 0x4, offset = 0x4, fixed_abs, tag = 'smem constant byte address 0x4 - core index']
  #allocation1 [shape = 'u32[72,128]{1,0:T(1,128)}', space=vmem, size = 0x9000, scoped, tag = 'internal scratch']
  %s0 = inlined_call_operand.vmem [shape: bf16[21,8], index: 0, kind: input, shape index: {}]
  %s1 = inlined_call_operand.vmem [shape: bf16[128,21], index: 1, kind: input, shape index: {}]
  %s2 = inlined_call_operand.vmem [shape: f32[128,1], index: 2, kind: input, shape index: {}]
  %s3 = inlined_call_operand.vmem [shape: bf16[4,128], index: 3, kind: input, shape index: {}]
  %s4 = inlined_call_operand.vmem [shape: f32[4,1], index: 4, kind: input, shape index: {}]
  %s5 = inlined_call_operand.hbm [shape: f32[4,8], index: 5, kind: output, shape index: {}]
  %s6 = sld [smem:[#allocation0]]
  $region30: #{tpu_custom_call.1} parent=0
    _
  %s8 = ssub.s32 1, %s6
  %s9 = scalar_select 0, %s8, %s6
  $region1: #{tpu_custom_call.1} parent=0
    #allocation2 [shape = 'u8[2048]{0}', space=vmem, size = 0x800, scoped, tag = 'output window, operand 0, single buffered']
    #allocation3 [shape = 's32[1]{0}', space=sflag, size = 0x4, scoped, tag = 'scoped memory for tpu_custom_call.1']
    %10 = vsyncpa [#allocation3], 0
    // Predicated region
    $region2: #{tpu_custom_call.1} parent=1 // pred_check
      _
    $region3: #{tpu_custom_call.1} parent=1 // pred_check_branch
      %12 = sbr.rel (0) target = $region5
    $region4: #{tpu_custom_call.1} parent=1 // pred_region
      _
    $region5: #{tpu_custom_call.1} parent=1 // pred_fallthru
      _
    // Predicated region
    $region6: #{tpu_custom_call.1} parent=1 // pred_check
      _
    $region7: #{tpu_custom_call.1} parent=1 // pred_check_branch
      %14 = sbr.rel (0) target = $region9
    $region8: #{tpu_custom_call.1} parent=1 // pred_region
      _
    $region9: #{tpu_custom_call.1} parent=1 // pred_fallthru
      _
    // Predicated region
    $region10: #{tpu_custom_call.1} parent=1 // pred_check
      _
    $region11: #{tpu_custom_call.1} parent=1 // pred_check_branch
      %16 = sbr.rel (0) target = $region13
    $region12: #{tpu_custom_call.1} parent=1 // pred_region
      _
    $region13: #{tpu_custom_call.1} parent=1 // pred_fallthru
      _
    // Predicated region
    $region14: #{tpu_custom_call.1} parent=1 // pred_check
      _
    $region15: #{tpu_custom_call.1} parent=1 // pred_check_branch
      %18 = sbr.rel (0) target = $region17
    $region16: #{tpu_custom_call.1} parent=1 // pred_region
      _
    $region17: #{tpu_custom_call.1} parent=1 // pred_fallthru
      _
    // Predicated region
    $region18: #{tpu_custom_call.1} parent=1 // pred_check
      _
    $region19: #{tpu_custom_call.1} parent=1 // pred_check_branch
      %20 = sbr.rel (0) target = $region21
    $region20: #{tpu_custom_call.1} parent=1 // pred_region
      _
    $region21: #{tpu_custom_call.1} parent=1 // pred_fallthru
      _
    %v22 = vld [vmem:[%s1] sm:$0xf]
    %v23 = vld [vmem:[%s1 + $0x4] sm:$0xf]
    %v24 = vld [vmem:[%s1 + $0x8] sm:$0xf]
    %v25 = vld [vmem:[%s1 + $0xc] sm:$0xf]
    %v26 = vld [vmem:[%s1 + $0x10] sm:$0xf]
    %v27 = vld [vmem:[%s1 + $0x14] sm:$0xf]
    %v28 = vld [vmem:[%s1 + $0x18] sm:$0xf]
    %v29 = vld [vmem:[%s1 + $0x1c] sm:$0xf]
    %v30 = vld [vmem:[%s1 + $0x20] sm:$0xf]
    %v31 = vld [vmem:[%s1 + $0x24] sm:$0xf]
    %v32 = vld [vmem:[%s1 + $0x28] sm:$0xf]
    %v33 = vld [vmem:[%s1 + $0x2c] sm:$0xf]
    %v34 = vld [vmem:[%s1 + $0x30] sm:$0xf]
    %v35 = vld [vmem:[%s1 + $0x34] sm:$0xf]
    %v36 = vld [vmem:[%s1 + $0x38] sm:$0xf]
    %v37 = vld [vmem:[%s1 + $0x3c] sm:$0xf]
    %v38 = vld [vmem:[%s0] sm:$0xf]
    %v39 = vld [vmem:[%s0 + $0x4] sm:$0xf]
    %v40 = vld [vmem:[%s0 + $0x8] sm:$0x7]
    %v41 = vld [vmem:[%s2] sm:$0xff]
    %v42 = vld [vmem:[%s2 + $0x8] sm:$0xff]
    %v43 = vld [vmem:[%s2 + $0x10] sm:$0xff]
    %v44 = vld [vmem:[%s2 + $0x18] sm:$0xff]
    %v45 = vld [vmem:[%s2 + $0x20] sm:$0xff]
    %v46 = vld [vmem:[%s2 + $0x28] sm:$0xff]
    %v47 = vld [vmem:[%s2 + $0x30] sm:$0xff]
    %v48 = vld [vmem:[%s2 + $0x38] sm:$0xff]
    %v49 = vld [vmem:[%s2 + $0x40] sm:$0xff]
    %v50 = vld [vmem:[%s2 + $0x48] sm:$0xff]
    %v51 = vld [vmem:[%s2 + $0x50] sm:$0xff]
    %v52 = vld [vmem:[%s2 + $0x58] sm:$0xff]
    %v53 = vld [vmem:[%s2 + $0x60] sm:$0xff]
    %v54 = vld [vmem:[%s2 + $0x68] sm:$0xff]
    %v55 = vld [vmem:[%s2 + $0x70] sm:$0xff]
    %v56 = vld [vmem:[%s2 + $0x78] sm:$0xff]
    %58 = vset.pattern.permute.xlu0 0
    %59 = vperm.xlu0 %58, %v41
    %v60 = vpop.permute.xlu0 %59
    %63 = vset.pattern.permute.xlu0 0
    %64 = vperm.xlu0 %63, %v42
    %v65 = vpop.permute.xlu0 %64
    %68 = vset.pattern.permute.xlu0 0
    %69 = vperm.xlu0 %68, %v43
    %v70 = vpop.permute.xlu0 %69
    %73 = vset.pattern.permute.xlu0 0
    %74 = vperm.xlu0 %73, %v44
    %v75 = vpop.permute.xlu0 %74
    %78 = vset.pattern.permute.xlu0 0
    %79 = vperm.xlu0 %78, %v45
    %v80 = vpop.permute.xlu0 %79
    %83 = vset.pattern.permute.xlu0 0
    %84 = vperm.xlu0 %83, %v46
    %v85 = vpop.permute.xlu0 %84
    %88 = vset.pattern.permute.xlu0 0
    %89 = vperm.xlu0 %88, %v47
    %v90 = vpop.permute.xlu0 %89
    %93 = vset.pattern.permute.xlu0 0
    %94 = vperm.xlu0 %93, %v48
    %v95 = vpop.permute.xlu0 %94
    %98 = vset.pattern.permute.xlu0 0
    %99 = vperm.xlu0 %98, %v49
    %v100 = vpop.permute.xlu0 %99
    %103 = vset.pattern.permute.xlu0 0
    %104 = vperm.xlu0 %103, %v50
    %v105 = vpop.permute.xlu0 %104
    %108 = vset.pattern.permute.xlu0 0
    %109 = vperm.xlu0 %108, %v51
    %v110 = vpop.permute.xlu0 %109
    %113 = vset.pattern.permute.xlu0 0
    %114 = vperm.xlu0 %113, %v52
    %v115 = vpop.permute.xlu0 %114
    %118 = vset.pattern.permute.xlu0 0
    %119 = vperm.xlu0 %118, %v53
    %v120 = vpop.permute.xlu0 %119
    %123 = vset.pattern.permute.xlu0 0
    %124 = vperm.xlu0 %123, %v54
    %v125 = vpop.permute.xlu0 %124
    %128 = vset.pattern.permute.xlu0 0
    %129 = vperm.xlu0 %128, %v55
    %v130 = vpop.permute.xlu0 %129
    %133 = vset.pattern.permute.xlu0 0
    %134 = vperm.xlu0 %133, %v56
    %v135 = vpop.permute.xlu0 %134
    %v153 = vunpack.c.l.b16 %v22
    %v154 = vunpack.c.l.b16 %v23
    %v155 = vunpack.c.l.b16 %v24
    %v156 = vunpack.c.l.b16 %v25
    %v157 = vunpack.c.l.b16 %v26
    %v158 = vunpack.c.l.b16 %v27
    %v159 = vunpack.c.l.b16 %v28
    %v160 = vunpack.c.l.b16 %v29
    %v161 = vunpack.c.l.b16 %v30
    %v162 = vunpack.c.l.b16 %v31
    %v163 = vunpack.c.l.b16 %v32
    %v164 = vunpack.c.l.b16 %v33
    %v165 = vunpack.c.l.b16 %v34
    %v166 = vunpack.c.l.b16 %v35
    %v167 = vunpack.c.l.b16 %v36
    %v168 = vunpack.c.l.b16 %v37
    %v169 = vpack.c.b16 %v154, %v153
    %v170 = vpack.c.b16 %v156, %v155
    %v171 = vpack.c.b16 %v158, %v157
    %v172 = vpack.c.b16 %v160, %v159
    %v173 = vpack.c.b16 %v162, %v161
    %v174 = vpack.c.b16 %v164, %v163
    %v175 = vpack.c.b16 %v166, %v165
    %v176 = vpack.c.b16 %v168, %v167
    %v180 = vunpack.c.l.b16 %v38
    %v181 = vunpack.c.l.b16 %v39
    %v182 = vunpack.c.l.b16 %v40
    %v183 = vpack.c.b16 %v181, %v180
    %v184 = vpack.c.b16 %v182, %v182
    %vm186 = vcmask 171008
    %v188 = vsel %vm186, %v169, 0
    %v191 = vsel %vm186, %v170, 0
    %v194 = vsel %vm186, %v171, 0
    %v197 = vsel %vm186, %v172, 0
    %v200 = vsel %vm186, %v173, 0
    %v203 = vsel %vm186, %v174, 0
    %v206 = vsel %vm186, %v175, 0
    %v209 = vsel %vm186, %v176, 0
    %vm211 = vcmask 1041408
    %vm212 = vcmask 1042432
    %v213 = vsel %vm211, 4294967295, 65535
    %v214 = vsel %vm212, %v213, 0
    %v216 = vand.u32 %v184, %v214
    %218 = vmatpush.bf16.msra.mxu0 0
    %219 = vmatpush.bf16.msra.mxu0 0
    %220 = vmatpush.bf16.msra.mxu0 0
    %221 = vmatpush.bf16.msra.mxu0 0
    %222 = vmatpush.bf16.msra.mxu0 0
    %223 = vmatpush.bf16.msra.mxu0 0
    %224 = vmatpush.bf16.msra.mxu0 %v216
    %225 = vmatpush.bf16.msra.mxu0 %v183
    %226 = vmatmul.bf16.gmra.mxu0 %v188
    %v227 = vpop.f32.mrf.mxu0
    %v228 = vadd.f32 %v60, %v227
    %v229 = vpop.f32.mrf.mxu0
    %v230 = vadd.f32 %v65, %v229
    %231 = vmatmul.bf16.gmra.mxu0 %v191
    %v232 = vpop.f32.mrf.mxu0
    %v233 = vadd.f32 %v70, %v232
    %v234 = vpop.f32.mrf.mxu0
    %v235 = vadd.f32 %v75, %v234
    %236 = vmatmul.bf16.gmra.mxu0 %v194
    %v237 = vpop.f32.mrf.mxu0
    %v238 = vadd.f32 %v80, %v237
    %v239 = vpop.f32.mrf.mxu0
    %v240 = vadd.f32 %v85, %v239
    %241 = vmatmul.bf16.gmra.mxu0 %v197
    %v242 = vpop.f32.mrf.mxu0
    %v243 = vadd.f32 %v90, %v242
    %v244 = vpop.f32.mrf.mxu0
    %v245 = vadd.f32 %v95, %v244
    %246 = vmatmul.bf16.gmra.mxu0 %v200
    %v247 = vpop.f32.mrf.mxu0
    %v248 = vadd.f32 %v100, %v247
    %v249 = vpop.f32.mrf.mxu0
    %v250 = vadd.f32 %v105, %v249
    %251 = vmatmul.bf16.gmra.mxu0 %v203
    %v252 = vpop.f32.mrf.mxu0
    %v253 = vadd.f32 %v110, %v252
    %v254 = vpop.f32.mrf.mxu0
    %v255 = vadd.f32 %v115, %v254
    %256 = vmatmul.bf16.gmra.mxu0 %v206
    %v257 = vpop.f32.mrf.mxu0
    %v258 = vadd.f32 %v120, %v257
    %v259 = vpop.f32.mrf.mxu0
    %v260 = vadd.f32 %v125, %v259
    %261 = vmatmul.bf16.gmra.mxu0 %v209
    %v262 = vpop.f32.mrf.mxu0
    %v263 = vadd.f32 %v130, %v262
    %v264 = vpop.f32.mrf.mxu0
    %v265 = vadd.f32 %v135, %v264
    %266 = vdwg.mxu0
    %v267 = vmax.f32 %v228, 0.0
    %v268 = vmax.f32 %v230, 0.0
    %v269 = vmax.f32 %v233, 0.0
    %v270 = vmax.f32 %v235, 0.0
    %v271 = vmax.f32 %v238, 0.0
    %v272 = vmax.f32 %v240, 0.0
    %v273 = vmax.f32 %v243, 0.0
    %v274 = vmax.f32 %v245, 0.0
    %v275 = vmax.f32 %v248, 0.0
    %v276 = vmax.f32 %v250, 0.0
    %v277 = vmax.f32 %v253, 0.0
    %v278 = vmax.f32 %v255, 0.0
    %v279 = vmax.f32 %v258, 0.0
    %v280 = vmax.f32 %v260, 0.0
    %v281 = vmax.f32 %v263, 0.0
    %v282 = vmax.f32 %v265, 0.0
    %v283 = vld [vmem:[%s3] sm:$0x3]
    %v284 = vpack.c.bf16 %v268, %v267
    %v285 = vpack.c.bf16 %v270, %v269
    %v286 = vpack.c.bf16 %v272, %v271
    %v287 = vpack.c.bf16 %v274, %v273
    %v288 = vpack.c.bf16 %v276, %v275
    %v289 = vpack.c.bf16 %v278, %v277
    %v290 = vpack.c.bf16 %v280, %v279
    %v291 = vpack.c.bf16 %v282, %v281
    %v292 = vld [vmem:[%s4] sm:$0xf]
    %294 = vset.pattern.permute.xlu0 0
    %295 = vperm.xlu0 %294, %v292
    %v296 = vpop.permute.xlu0 %295
    %298 = vmatpush.bf16.msra.mxu0 %v291
    %299 = vmatpush.bf16.msra.mxu0 %v290
    %300 = vmatpush.bf16.msra.mxu0 %v289
    %301 = vmatpush.bf16.msra.mxu0 %v288
    %302 = vmatpush.bf16.msra.mxu0 %v287
    %303 = vmatpush.bf16.msra.mxu0 %v286
    %304 = vmatpush.bf16.msra.mxu0 %v285
    %305 = vmatpush.bf16.msra.mxu0 %v284
    %306 = vmatmul.bf16.gmra.mxu0 %v283
    %v307 = vpop.f32.mrf.mxu0
    %v308 = vadd.f32 %v296, %v307
    %v309 = vpop.f32.mrf.mxu0
    %310 = vdwg.mxu0
    %vm311 = vcmask 60416
    %312 = vst.msk [vmem:[#allocation2] sm:$0xf] %vm311, %v308
    // Predicated region
    $region22: #{tpu_custom_call.1} parent=1 // pred_check
      _
    $region23: #{tpu_custom_call.1} parent=1 // pred_check_branch
      %314 = sbr.rel (0) target = $region25
    $region24: #{tpu_custom_call.1} parent=1 // pred_region
      %316 = vsyncadd [#allocation3], 0
      %s318 = sshll.u32 [#allocation2], 4
      %s319 = int_to_ptr.vmem [resolvable:$true] %s318
      %s320 = sshll.u32 %s5, 4
      %s321 = int_to_ptr.hbm [resolvable:$true] %s320
      %323 = dma.vmem_to_hbm [thread:$0]  %s319, 64, %s321, [#allocation3]
    $region25: #{tpu_custom_call.1} parent=1 // pred_fallthru
      _
    // Predicated region
    $region26: #{tpu_custom_call.1} parent=1 // pred_check
      _
    $region27: #{tpu_custom_call.1} parent=1 // pred_check_branch
      %325 = sbr.rel (0) target = $region29
    $region28: #{tpu_custom_call.1} parent=1 // pred_region
      %327 = dma.done [#allocation3], 64
    $region29: #{tpu_custom_call.1} parent=1 // pred_fallthru
      _
    %328 = vsyncpa [#allocation3], 1

</llo_original>
